<compile_context>
chip_gen: v5e
topology: v5e:2x2
jax: 0.10.0
libtpu: 0.0.40
codegen_flags: <defaults>
</compile_context>

<pallas_src>
import jax
import jax.numpy as jnp
from jax.experimental import pallas as pl
from jax.experimental.pallas import tpu as pltpu

NUM_CHANNELS = 8
EPS = 1e-5
K = 5            # Conv1d kernel_size
PAD = K // 2     # Conv1d padding=2


def bridge_kernel(x_ref, w1_ref, g1_ref, be1_ref, w2_ref, g2_ref, be2_ref,
                  out_ref):
    B, L, C = x_ref.shape

    def pad_len(h_blc):
        # (B, L, C) -> (B, L + 2*PAD, C): zero halo rows, kept in registers
        # (no VMEM scratch round-trip).
        z = jnp.zeros((B, PAD, C), jnp.float32)
        return jnp.concatenate([z, h_blc, z], axis=1)

    def conv_bn_relu(h_blc, w_ref, g_ref, be_ref):
        hpad = pad_len(h_blc)                                  # (B, L+4, C) f32
        # im2col: one (B*L, K*C) x (K*C, C) matmul instead of K shallow ones.
        cols = [hpad[:, k:k + L, :] for k in range(K)]         # static slices
        patches = jnp.concatenate(cols, axis=-1).reshape(B * L, K * C)
        # bf16 operands, f32 accumulation: single MXU pass.
        h = jnp.dot(patches.astype(jnp.bfloat16), w_ref[...],
                    preferred_element_type=jnp.float32)        # (B*L, C) f32
        # Conv bias omitted on purpose: training-mode BN subtracts the batch
        # mean per channel, which cancels a per-channel constant exactly.
        # Training-mode BatchNorm1d (biased variance over N*L), folded into a
        # single fused scale/shift.
        mean = jnp.mean(h, axis=0, keepdims=True)              # (1, C)
        var = jnp.mean((h - mean) ** 2, axis=0, keepdims=True) # biased variance
        scale = g_ref[...] * jax.lax.rsqrt(var + EPS)          # (1, C)
        shift = be_ref[...] - mean * scale                     # (1, C)
        return jnp.maximum(h * scale + shift, 0.0)             # (B*L, C) f32

    x = x_ref[...].astype(jnp.float32)                         # (B, L, C)
    h1 = conv_bn_relu(x, w1_ref, g1_ref, be1_ref)
    h2 = conv_bn_relu(h1.reshape(B, L, C), w2_ref, g2_ref, be2_ref)
    out_ref[...] = h2.reshape(B, L, C).astype(out_ref.dtype)


@jax.jit
def bridge_forward(x_ncl, params):
    """x_ncl: (N, C, L) float32, exactly like the PyTorch module's input."""
    w1, b1, g1, be1, w2, b2, g2, be2 = params
    del b1, b2   # exactly cancelled by training-mode BN mean subtraction
    B, C, L = x_ncl.shape

    # NCL -> NLC so channels (128) land on the lane axis.
    x_nlc = jnp.transpose(x_ncl, (0, 2, 1))

    def prep_w(w):
        # PyTorch (Cout, Cin, K) -> im2col (K*Cin, Cout), bf16 for the MXU.
        # Row index k*Cin + cin matches the patch column ordering in-kernel.
        return jnp.transpose(w, (2, 1, 0)).reshape(K * C, C).astype(jnp.bfloat16)

    vmem = pl.BlockSpec(memory_space=pltpu.MemorySpace.VMEM)
    out_nlc = pl.pallas_call(
        bridge_kernel,
        out_shape=jax.ShapeDtypeStruct((B, L, C), x_ncl.dtype),
        in_specs=[vmem] * 7,
        out_specs=vmem,
    )(x_nlc, prep_w(w1), g1[None, :], be1[None, :],
      prep_w(w2), g2[None, :], be2[None, :])

    return jnp.transpose(out_nlc, (0, 2, 1))    # back to NCL


# ---------------- pure-JAX reference (for correctness check) ----------------
def _reference(x_ncl, params):
    w1, b1, g1, be1, w2, b2, g2, be2 = params

    def conv1d(x, w, b):
        y = jax.lax.conv_general_dilated(
            x, w, window_strides=(1,), padding=((PAD, PAD),),
            dimension_numbers=('NCH', 'OIH', 'NCH'),
            precision=jax.lax.Precision.HIGHEST)
        return y + b[None, :, None]

    def bn_relu(x, g, be):
        mean = jnp.mean(x, axis=(0, 2), keepdims=True)
        var = jnp.mean((x - mean) ** 2, axis=(0, 2), keepdims=True)
        y = (x - mean) * jax.lax.rsqrt(var + EPS) * g[None, :, None] + be[None, :, None]
        return jnp.maximum(y, 0.0)

    h = bn_relu(conv1d(x_ncl, w1, b1), g1, be1)
    return bn_relu(conv1d(h, w2, b2), g2, be2)


if __name__ == "__main__":
    cf = 16
    C = NUM_CHANNELS * cf        # 128
    B, L = 2, 16

    key = jax.random.PRNGKey(0)
    ks = jax.random.split(key, 9)
    x = jax.random.normal(ks[0], (B, C, L), jnp.float32)

    # Deterministic synthetic parameters (shapes from Bridge.__init__).
    w1 = 0.05 * jax.random.normal(ks[1], (C, C, K), jnp.float32)   # Conv1d weight
    b1 = 0.05 * jax.random.normal(ks[2], (C,), jnp.float32)        # Conv1d bias
    g1 = 1.0 + 0.1 * jax.random.normal(ks[3], (C,), jnp.float32)   # BN gamma
    be1 = 0.1 * jax.random.normal(ks[4], (C,), jnp.float32)        # BN beta
    w2 = 0.05 * jax.random.normal(ks[5], (C, C, K), jnp.float32)
    b2 = 0.05 * jax.random.normal(ks[6], (C,), jnp.float32)
    g2 = 1.0 + 0.1 * jax.random.normal(ks[7], (C,), jnp.float32)
    be2 = 0.1 * jax.random.normal(ks[8], (C,), jnp.float32)

    params = (w1, b1, g1, be1, w2, b2, g2, be2)

    out = jax.block_until_ready(bridge_forward(x, params))
    ref = jax.block_until_ready(_reference(x, params))

    assert out.shape == (B, C, L)
    # Kernel uses bf16 MXU operands (f32 accumulate) across two conv layers,
    # while the reference is f32 Precision.HIGHEST; BN rescaling amplifies the
    # small matmul rounding, hence the relaxed tolerance.  Real layout/weight
    # bugs would produce O(1) errors and still be caught.
    assert jnp.allclose(out, ref, atol=5e-2, rtol=2e-2), \
        f"max abs diff {jnp.max(jnp.abs(out - ref))}"

    print("KERNEL_OK")
</pallas_src>

<mosaic_0001>
module attributes {stable_mosaic.version = 11 : i64} {
  func.func @bridge_kernel(%arg0: memref<2x16x128xf32, #tpu.memory_space<vmem>>, %arg1: memref<640x128xbf16, #tpu.memory_space<vmem>>, %arg2: memref<1x128xf32, #tpu.memory_space<vmem>>, %arg3: memref<1x128xf32, #tpu.memory_space<vmem>>, %arg4: memref<640x128xbf16, #tpu.memory_space<vmem>>, %arg5: memref<1x128xf32, #tpu.memory_space<vmem>>, %arg6: memref<1x128xf32, #tpu.memory_space<vmem>>, %arg7: memref<2x16x128xf32, #tpu.memory_space<vmem>>) attributes {dimension_semantics = [], scalar_prefetch = 0 : i64, scratch_operands = 0 : i64, tpu.core_type = #tpu.core_type<tc>} {
    %c0 = arith.constant 0 : index
    %c0_0 = arith.constant 0 : index
    %c0_1 = arith.constant 0 : index
    %0 = vector.load %arg0[%c0, %c0_0, %c0_1] : memref<2x16x128xf32, #tpu.memory_space<vmem>>, vector<2x16x128xf32>
    %cst = arith.constant 0.000000e+00 : f32
    %1 = vector.broadcast %cst : f32 to vector<2x2x128xf32>
    %2 = tpu.concatenate %1, %0, %1 in 1 : vector<2x2x128xf32>, vector<2x16x128xf32>, vector<2x2x128xf32> -> vector<2x20x128xf32>
    %3 = vector.extract_strided_slice %2 {offsets = [0, 0, 0], sizes = [2, 16, 128], strides = [1, 1, 1]} : vector<2x20x128xf32> to vector<2x16x128xf32>
    %4 = vector.extract_strided_slice %2 {offsets = [0, 1, 0], sizes = [2, 16, 128], strides = [1, 1, 1]} : vector<2x20x128xf32> to vector<2x16x128xf32>
    %5 = vector.extract_strided_slice %2 {offsets = [0, 2, 0], sizes = [2, 16, 128], strides = [1, 1, 1]} : vector<2x20x128xf32> to vector<2x16x128xf32>
    %6 = vector.extract_strided_slice %2 {offsets = [0, 3, 0], sizes = [2, 16, 128], strides = [1, 1, 1]} : vector<2x20x128xf32> to vector<2x16x128xf32>
    %7 = vector.extract_strided_slice %2 {offsets = [0, 4, 0], sizes = [2, 16, 128], strides = [1, 1, 1]} : vector<2x20x128xf32> to vector<2x16x128xf32>
    %8 = tpu.concatenate %3, %4, %5, %6, %7 in 2 : vector<2x16x128xf32>, vector<2x16x128xf32>, vector<2x16x128xf32>, vector<2x16x128xf32>, vector<2x16x128xf32> -> vector<2x16x640xf32>
    %9 = vector.shape_cast %8 : vector<2x16x640xf32> to vector<32x640xf32>
    %10 = arith.truncf %9 : vector<32x640xf32> to vector<32x640xbf16>
    %c0_2 = arith.constant 0 : index
    %c0_3 = arith.constant 0 : index
    %11 = vector.load %arg1[%c0_2, %c0_3] : memref<640x128xbf16, #tpu.memory_space<vmem>>, vector<640x128xbf16>
    %cst_4 = arith.constant dense<0.000000e+00> : vector<32x128xf32>
    %12 = tpu.matmul %10, %11, %cst_4 {dimension_numbers = #tpu.dot_dimension_numbers<[1], [0], [0], [1], [0, 0, 1, 1], [], []>} : vector<32x640xbf16>, vector<640x128xbf16>, vector<32x128xf32> -> vector<32x128xf32>
    %cst_5 = arith.constant dense<0.000000e+00> : vector<128xf32>
    %13 = vector.multi_reduction <add>, %12, %cst_5 [0] : vector<32x128xf32> to vector<128xf32>
    %14 = vector.shape_cast %13 : vector<128xf32> to vector<1x128xf32>
    %cst_6 = arith.constant 3.200000e+01 : f32
    %15 = vector.broadcast %cst_6 : f32 to vector<1x128xf32>
    %16 = arith.divf %14, %15 : vector<1x128xf32>
    %17 = vector.broadcast %16 : vector<1x128xf32> to vector<32x128xf32>
    %18 = arith.subf %12, %17 : vector<32x128xf32>
    %19 = arith.mulf %18, %18 : vector<32x128xf32>
    %cst_7 = arith.constant dense<0.000000e+00> : vector<128xf32>
    %20 = vector.multi_reduction <add>, %19, %cst_7 [0] : vector<32x128xf32> to vector<128xf32>
    %21 = vector.shape_cast %20 : vector<128xf32> to vector<1x128xf32>
    %cst_8 = arith.constant 3.200000e+01 : f32
    %22 = vector.broadcast %cst_8 : f32 to vector<1x128xf32>
    %23 = arith.divf %21, %22 : vector<1x128xf32>
    %c0_9 = arith.constant 0 : index
    %c0_10 = arith.constant 0 : index
    %24 = vector.load %arg2[%c0_9, %c0_10] : memref<1x128xf32, #tpu.memory_space<vmem>>, vector<1x128xf32>
    %cst_11 = arith.constant 9.99999974E-6 : f32
    %25 = vector.broadcast %cst_11 : f32 to vector<1x128xf32>
    %26 = arith.addf %23, %25 : vector<1x128xf32>
    %27 = math.rsqrt %26 : vector<1x128xf32>
    %28 = arith.mulf %24, %27 : vector<1x128xf32>
    %c0_12 = arith.constant 0 : index
    %c0_13 = arith.constant 0 : index
    %29 = vector.load %arg3[%c0_12, %c0_13] : memref<1x128xf32, #tpu.memory_space<vmem>>, vector<1x128xf32>
    %30 = arith.mulf %16, %28 : vector<1x128xf32>
    %31 = arith.subf %29, %30 : vector<1x128xf32>
    %32 = vector.broadcast %28 : vector<1x128xf32> to vector<32x128xf32>
    %33 = arith.mulf %12, %32 : vector<32x128xf32>
    %34 = vector.broadcast %31 : vector<1x128xf32> to vector<32x128xf32>
    %35 = arith.addf %33, %34 : vector<32x128xf32>
    %cst_14 = arith.constant 0.000000e+00 : f32
    %36 = vector.broadcast %cst_14 : f32 to vector<32x128xf32>
    %37 = arith.maximumf %35, %36 : vector<32x128xf32>
    %38 = vector.shape_cast %37 : vector<32x128xf32> to vector<2x16x128xf32>
    %cst_15 = arith.constant 0.000000e+00 : f32
    %39 = vector.broadcast %cst_15 : f32 to vector<2x2x128xf32>
    %40 = tpu.concatenate %39, %38, %39 in 1 : vector<2x2x128xf32>, vector<2x16x128xf32>, vector<2x2x128xf32> -> vector<2x20x128xf32>
    %41 = vector.extract_strided_slice %40 {offsets = [0, 0, 0], sizes = [2, 16, 128], strides = [1, 1, 1]} : vector<2x20x128xf32> to vector<2x16x128xf32>
    %42 = vector.extract_strided_slice %40 {offsets = [0, 1, 0], sizes = [2, 16, 128], strides = [1, 1, 1]} : vector<2x20x128xf32> to vector<2x16x128xf32>
    %43 = vector.extract_strided_slice %40 {offsets = [0, 2, 0], sizes = [2, 16, 128], strides = [1, 1, 1]} : vector<2x20x128xf32> to vector<2x16x128xf32>
    %44 = vector.extract_strided_slice %40 {offsets = [0, 3, 0], sizes = [2, 16, 128], strides = [1, 1, 1]} : vector<2x20x128xf32> to vector<2x16x128xf32>
    %45 = vector.extract_strided_slice %40 {offsets = [0, 4, 0], sizes = [2, 16, 128], strides = [1, 1, 1]} : vector<2x20x128xf32> to vector<2x16x128xf32>
    %46 = tpu.concatenate %41, %42, %43, %44, %45 in 2 : vector<2x16x128xf32>, vector<2x16x128xf32>, vector<2x16x128xf32>, vector<2x16x128xf32>, vector<2x16x128xf32> -> vector<2x16x640xf32>
    %47 = vector.shape_cast %46 : vector<2x16x640xf32> to vector<32x640xf32>
    %48 = arith.truncf %47 : vector<32x640xf32> to vector<32x640xbf16>
    %c0_16 = arith.constant 0 : index
    %c0_17 = arith.constant 0 : index
    %49 = vector.load %arg4[%c0_16, %c0_17] : memref<640x128xbf16, #tpu.memory_space<vmem>>, vector<640x128xbf16>
    %cst_18 = arith.constant dense<0.000000e+00> : vector<32x128xf32>
    %50 = tpu.matmul %48, %49, %cst_18 {dimension_numbers = #tpu.dot_dimension_numbers<[1], [0], [0], [1], [0, 0, 1, 1], [], []>} : vector<32x640xbf16>, vector<640x128xbf16>, vector<32x128xf32> -> vector<32x128xf32>
    %cst_19 = arith.constant dense<0.000000e+00> : vector<128xf32>
    %51 = vector.multi_reduction <add>, %50, %cst_19 [0] : vector<32x128xf32> to vector<128xf32>
    %52 = vector.shape_cast %51 : vector<128xf32> to vector<1x128xf32>
    %cst_20 = arith.constant 3.200000e+01 : f32
    %53 = vector.broadcast %cst_20 : f32 to vector<1x128xf32>
    %54 = arith.divf %52, %53 : vector<1x128xf32>
    %55 = vector.broadcast %54 : vector<1x128xf32> to vector<32x128xf32>
    %56 = arith.subf %50, %55 : vector<32x128xf32>
    %57 = arith.mulf %56, %56 : vector<32x128xf32>
    %cst_21 = arith.constant dense<0.000000e+00> : vector<128xf32>
    %58 = vector.multi_reduction <add>, %57, %cst_21 [0] : vector<32x128xf32> to vector<128xf32>
    %59 = vector.shape_cast %58 : vector<128xf32> to vector<1x128xf32>
    %cst_22 = arith.constant 3.200000e+01 : f32
    %60 = vector.broadcast %cst_22 : f32 to vector<1x128xf32>
    %61 = arith.divf %59, %60 : vector<1x128xf32>
    %c0_23 = arith.constant 0 : index
    %c0_24 = arith.constant 0 : index
    %62 = vector.load %arg5[%c0_23, %c0_24] : memref<1x128xf32, #tpu.memory_space<vmem>>, vector<1x128xf32>
    %cst_25 = arith.constant 9.99999974E-6 : f32
    %63 = vector.broadcast %cst_25 : f32 to vector<1x128xf32>
    %64 = arith.addf %61, %63 : vector<1x128xf32>
    %65 = math.rsqrt %64 : vector<1x128xf32>
    %66 = arith.mulf %62, %65 : vector<1x128xf32>
    %c0_26 = arith.constant 0 : index
    %c0_27 = arith.constant 0 : index
    %67 = vector.load %arg6[%c0_26, %c0_27] : memref<1x128xf32, #tpu.memory_space<vmem>>, vector<1x128xf32>
    %68 = arith.mulf %54, %66 : vector<1x128xf32>
    %69 = arith.subf %67, %68 : vector<1x128xf32>
    %70 = vector.broadcast %66 : vector<1x128xf32> to vector<32x128xf32>
    %71 = arith.mulf %50, %70 : vector<32x128xf32>
    %72 = vector.broadcast %69 : vector<1x128xf32> to vector<32x128xf32>
    %73 = arith.addf %71, %72 : vector<32x128xf32>
    %cst_28 = arith.constant 0.000000e+00 : f32
    %74 = vector.broadcast %cst_28 : f32 to vector<32x128xf32>
    %75 = arith.maximumf %73, %74 : vector<32x128xf32>
    %76 = vector.shape_cast %75 : vector<32x128xf32> to vector<2x16x128xf32>
    %c0_29 = arith.constant 0 : index
    %c0_30 = arith.constant 0 : index
    %c0_31 = arith.constant 0 : index
    %77 = vector.load %arg7[%c0_29, %c0_30, %c0_31] : memref<2x16x128xf32, #tpu.memory_space<vmem>>, vector<2x16x128xf32>
    tpu.vector_store %arg7[%c0_29, %c0_30, %c0_31], %76 {strides = array<i32>} : memref<2x16x128xf32, #tpu.memory_space<vmem>>, vector<2x16x128xf32>,
    return
  }
}

</mosaic_0001>

<llo_original>
// kernel: bridge_forward.1
$region0: #{bridge_forward.1}
  #allocation0 [shape = 'u32[]', space=smem, size = 0x4, offset = 0x4, fixed_abs, tag = 'smem constant byte address 0x4 - core index']
  #allocation1 [shape = 'u32[72,128]{1,0:T(1,128)}', space=vmem, size = 0x9000, scoped, tag = 'internal scratch']
  %s0 = inlined_call_operand.vmem [shape: f32[2,16,128], index: 0, kind: input, shape index: {}]
  %s1 = inlined_call_operand.vmem [shape: bf16[640,128], index: 1, kind: input, shape index: {}]
  %s2 = inlined_call_operand.vmem [shape: f32[1,128], index: 2, kind: input, shape index: {}]
  %s3 = inlined_call_operand.vmem [shape: f32[1,128], index: 3, kind: input, shape index: {}]
  %s4 = inlined_call_operand.vmem [shape: bf16[640,128], index: 4, kind: input, shape index: {}]
  %s5 = inlined_call_operand.vmem [shape: f32[1,128], index: 5, kind: input, shape index: {}]
  %s6 = inlined_call_operand.vmem [shape: f32[1,128], index: 6, kind: input, shape index: {}]
  %s7 = inlined_call_operand.hbm [shape: f32[2,16,128], index: 7, kind: output, shape index: {}]
  %s8 = sld [smem:[#allocation0]]
  $region38: #{bridge_forward.1} parent=0
    _
  %s10 = ssub.s32 1, %s8
  %s11 = scalar_select 0, %s10, %s8
  $region1: #{bridge_forward.1} parent=0
    #allocation2 [shape = 'u8[16384]{0}', space=vmem, size = 0x4000, scoped, tag = 'output window, operand 0, single buffered']
    #allocation3 [shape = 's32[1]{0}', space=sflag, size = 0x4, scoped, tag = 'scoped memory for bridge_forward.1']
    %12 = vsyncpa [#allocation3], 0
    // Predicated region
    $region2: #{bridge_forward.1} parent=1 // pred_check
      _
    $region3: #{bridge_forward.1} parent=1 // pred_check_branch
      %14 = sbr.rel (0) target = $region5
    $region4: #{bridge_forward.1} parent=1 // pred_region
      _
    $region5: #{bridge_forward.1} parent=1 // pred_fallthru
      _
    // Predicated region
    $region6: #{bridge_forward.1} parent=1 // pred_check
      _
    $region7: #{bridge_forward.1} parent=1 // pred_check_branch
      %16 = sbr.rel (0) target = $region9
    $region8: #{bridge_forward.1} parent=1 // pred_region
      _
    $region9: #{bridge_forward.1} parent=1 // pred_fallthru
      _
    // Predicated region
    $region10: #{bridge_forward.1} parent=1 // pred_check
      _
    $region11: #{bridge_forward.1} parent=1 // pred_check_branch
      %18 = sbr.rel (0) target = $region13
    $region12: #{bridge_forward.1} parent=1 // pred_region
      _
    $region13: #{bridge_forward.1} parent=1 // pred_fallthru
      _
    // Predicated region
    $region14: #{bridge_forward.1} parent=1 // pred_check
      _
    $region15: #{bridge_forward.1} parent=1 // pred_check_branch
      %20 = sbr.rel (0) target = $region17
    $region16: #{bridge_forward.1} parent=1 // pred_region
      _
    $region17: #{bridge_forward.1} parent=1 // pred_fallthru
      _
    // Predicated region
    $region18: #{bridge_forward.1} parent=1 // pred_check
      _
    $region19: #{bridge_forward.1} parent=1 // pred_check_branch
      %22 = sbr.rel (0) target = $region21
    $region20: #{bridge_forward.1} parent=1 // pred_region
      _
    $region21: #{bridge_forward.1} parent=1 // pred_fallthru
      _
    // Predicated region
    $region22: #{bridge_forward.1} parent=1 // pred_check
      _
    $region23: #{bridge_forward.1} parent=1 // pred_check_branch
      %24 = sbr.rel (0) target = $region25
    $region24: #{bridge_forward.1} parent=1 // pred_region
      _
    $region25: #{bridge_forward.1} parent=1 // pred_fallthru
      _
    // Predicated region
    $region26: #{bridge_forward.1} parent=1 // pred_check
      _
    $region27: #{bridge_forward.1} parent=1 // pred_check_branch
      %26 = sbr.rel (0) target = $region29
    $region28: #{bridge_forward.1} parent=1 // pred_region
      _
    $region29: #{bridge_forward.1} parent=1 // pred_fallthru
      _
    %v27 = vld [vmem:[%s0] sm:$0xff]
    %v28 = vld [vmem:[%s0 + $0x8] sm:$0xff]
    %v29 = vld [vmem:[%s0 + $0x10] sm:$0xff]
    %v30 = vld [vmem:[%s0 + $0x18] sm:$0xff]
    %vm35 = vcmask 1041408
    %v36 = vrot.slane %v27, 6
    %v37 = vrot.slane %v28, 6
    %v38 = vsel %vm35, %v36, %v37
    %v39 = vrot.slane %v29, 6
    %v40 = vrot.slane %v30, 6
    %v41 = vsel %vm35, %v39, %v40
    %v48 = vsel %vm35, 0.0, %v36
    %v49 = vsel %vm35, 0.0, %v39
    %v50 = vsel %vm35, %v37, 0.0
    %v51 = vsel %vm35, %v40, 0.0
    %vm56 = vcmask 1046528
    %v57 = vrot.slane %v48, 1
    %v58 = vrot.slane %v38, 1
    %v59 = vsel %vm56, %v57, %v58
    %v60 = vrot.slane %v50, 1
    %v61 = vsel %vm56, %v58, %v60
    %v62 = vrot.slane %v49, 1
    %v63 = vrot.slane %v41, 1
    %v64 = vsel %vm56, %v62, %v63
    %v65 = vrot.slane %v51, 1
    %v66 = vsel %vm56, %v63, %v65
    %vm71 = vcmask 1045504
    %v72 = vrot.slane %v48, 2
    %v73 = vrot.slane %v38, 2
    %v74 = vsel %vm71, %v72, %v73
    %v75 = vrot.slane %v50, 2
    %v76 = vsel %vm71, %v73, %v75
    %v77 = vrot.slane %v49, 2
    %v78 = vrot.slane %v41, 2
    %v79 = vsel %vm71, %v77, %v78
    %v80 = vrot.slane %v51, 2
    %v81 = vsel %vm71, %v78, %v80
    %vm86 = vcmask 1044480
    %v87 = vrot.slane %v48, 3
    %v88 = vrot.slane %v38, 3
    %v89 = vsel %vm86, %v87, %v88
    %v90 = vrot.slane %v50, 3
    %v91 = vsel %vm86, %v88, %v90
    %v92 = vrot.slane %v49, 3
    %v93 = vrot.slane %v41, 3
    %v94 = vsel %vm86, %v92, %v93
    %v95 = vrot.slane %v51, 3
    %v96 = vsel %vm86, %v93, %v95
    %vm101 = vcmask 1043456
    %v102 = vrot.slane %v48, 4
    %v103 = vrot.slane %v38, 4
    %v104 = vsel %vm101, %v102, %v103
    %v105 = vrot.slane %v50, 4
    %v106 = vsel %vm101, %v103, %v105
    %v107 = vrot.slane %v49, 4
    %v108 = vrot.slane %v41, 4
    %v109 = vsel %vm101, %v107, %v108
    %v110 = vrot.slane %v51, 4
    %v111 = vsel %vm101, %v108, %v110
    %v116 = vpack.c.bf16 %v38, %v48
    %v117 = vpack.c.bf16 %v61, %v59
    %v118 = vpack.c.bf16 %v76, %v74
    %v119 = vpack.c.bf16 %v91, %v89
    %v120 = vpack.c.bf16 %v106, %v104
    %v121 = vpack.c.bf16 %v41, %v49
    %v122 = vpack.c.bf16 %v66, %v64
    %v123 = vpack.c.bf16 %v81, %v79
    %v124 = vpack.c.bf16 %v96, %v94
    %v125 = vpack.c.bf16 %v111, %v109
    %v126 = vld [vmem:[%s1] sm:$0xf]
    %v127 = vld [vmem:[%s1 + $0x4] sm:$0xf]
    %v128 = vld [vmem:[%s1 + $0x8] sm:$0xf]
    %v129 = vld [vmem:[%s1 + $0xc] sm:$0xf]
    %v130 = vld [vmem:[%s1 + $0x10] sm:$0xf]
    %v131 = vld [vmem:[%s1 + $0x14] sm:$0xf]
    %v132 = vld [vmem:[%s1 + $0x18] sm:$0xf]
    %v133 = vld [vmem:[%s1 + $0x1c] sm:$0xf]
    %v134 = vld [vmem:[%s1 + $0x20] sm:$0xf]
    %v135 = vld [vmem:[%s1 + $0x24] sm:$0xf]
    %v136 = vld [vmem:[%s1 + $0x28] sm:$0xf]
    %v137 = vld [vmem:[%s1 + $0x2c] sm:$0xf]
    %v138 = vld [vmem:[%s1 + $0x30] sm:$0xf]
    %v139 = vld [vmem:[%s1 + $0x34] sm:$0xf]
    %v140 = vld [vmem:[%s1 + $0x38] sm:$0xf]
    %v141 = vld [vmem:[%s1 + $0x3c] sm:$0xf]
    %v142 = vld [vmem:[%s1 + $0x40] sm:$0xf]
    %v143 = vld [vmem:[%s1 + $0x44] sm:$0xf]
    %v144 = vld [vmem:[%s1 + $0x48] sm:$0xf]
    %v145 = vld [vmem:[%s1 + $0x4c] sm:$0xf]
    %v146 = vld [vmem:[%s1 + $0x50] sm:$0xf]
    %v147 = vld [vmem:[%s1 + $0x54] sm:$0xf]
    %v148 = vld [vmem:[%s1 + $0x58] sm:$0xf]
    %v149 = vld [vmem:[%s1 + $0x5c] sm:$0xf]
    %v150 = vld [vmem:[%s1 + $0x60] sm:$0xf]
    %v151 = vld [vmem:[%s1 + $0x64] sm:$0xf]
    %v152 = vld [vmem:[%s1 + $0x68] sm:$0xf]
    %v153 = vld [vmem:[%s1 + $0x6c] sm:$0xf]
    %v154 = vld [vmem:[%s1 + $0x70] sm:$0xf]
    %v155 = vld [vmem:[%s1 + $0x74] sm:$0xf]
    %v156 = vld [vmem:[%s1 + $0x78] sm:$0xf]
    %v157 = vld [vmem:[%s1 + $0x7c] sm:$0xf]
    %v158 = vld [vmem:[%s1 + $0x80] sm:$0xf]
    %v159 = vld [vmem:[%s1 + $0x84] sm:$0xf]
    %v160 = vld [vmem:[%s1 + $0x88] sm:$0xf]
    %v161 = vld [vmem:[%s1 + $0x8c] sm:$0xf]
    %v162 = vld [vmem:[%s1 + $0x90] sm:$0xf]
    %v163 = vld [vmem:[%s1 + $0x94] sm:$0xf]
    %v164 = vld [vmem:[%s1 + $0x98] sm:$0xf]
    %v165 = vld [vmem:[%s1 + $0x9c] sm:$0xf]
    %v166 = vld [vmem:[%s1 + $0xa0] sm:$0xf]
    %v167 = vld [vmem:[%s1 + $0xa4] sm:$0xf]
    %v168 = vld [vmem:[%s1 + $0xa8] sm:$0xf]
    %v169 = vld [vmem:[%s1 + $0xac] sm:$0xf]
    %v170 = vld [vmem:[%s1 + $0xb0] sm:$0xf]
    %v171 = vld [vmem:[%s1 + $0xb4] sm:$0xf]
    %v172 = vld [vmem:[%s1 + $0xb8] sm:$0xf]
    %v173 = vld [vmem:[%s1 + $0xbc] sm:$0xf]
    %v174 = vld [vmem:[%s1 + $0xc0] sm:$0xf]
    %v175 = vld [vmem:[%s1 + $0xc4] sm:$0xf]
    %v176 = vld [vmem:[%s1 + $0xc8] sm:$0xf]
    %v177 = vld [vmem:[%s1 + $0xcc] sm:$0xf]
    %v178 = vld [vmem:[%s1 + $0xd0] sm:$0xf]
    %v179 = vld [vmem:[%s1 + $0xd4] sm:$0xf]
    %v180 = vld [vmem:[%s1 + $0xd8] sm:$0xf]
    %v181 = vld [vmem:[%s1 + $0xdc] sm:$0xf]
    %v182 = vld [vmem:[%s1 + $0xe0] sm:$0xf]
    %v183 = vld [vmem:[%s1 + $0xe4] sm:$0xf]
    %v184 = vld [vmem:[%s1 + $0xe8] sm:$0xf]
    %v185 = vld [vmem:[%s1 + $0xec] sm:$0xf]
    %v186 = vld [vmem:[%s1 + $0xf0] sm:$0xf]
    %v187 = vld [vmem:[%s1 + $0xf4] sm:$0xf]
    %v188 = vld [vmem:[%s1 + $0xf8] sm:$0xf]
    %v189 = vld [vmem:[%s1 + $0xfc] sm:$0xf]
    %v190 = vld [vmem:[%s1 + $0x100] sm:$0xf]
    %v191 = vld [vmem:[%s1 + $0x104] sm:$0xf]
    %v192 = vld [vmem:[%s1 + $0x108] sm:$0xf]
    %v193 = vld [vmem:[%s1 + $0x10c] sm:$0xf]
    %v194 = vld [vmem:[%s1 + $0x110] sm:$0xf]
    %v195 = vld [vmem:[%s1 + $0x114] sm:$0xf]
    %v196 = vld [vmem:[%s1 + $0x118] sm:$0xf]
    %v197 = vld [vmem:[%s1 + $0x11c] sm:$0xf]
    %v198 = vld [vmem:[%s1 + $0x120] sm:$0xf]
    %v199 = vld [vmem:[%s1 + $0x124] sm:$0xf]
    %v200 = vld [vmem:[%s1 + $0x128] sm:$0xf]
    %v201 = vld [vmem:[%s1 + $0x12c] sm:$0xf]
    %v202 = vld [vmem:[%s1 + $0x130] sm:$0xf]
    %v203 = vld [vmem:[%s1 + $0x134] sm:$0xf]
    %v204 = vld [vmem:[%s1 + $0x138] sm:$0xf]
    %v205 = vld [vmem:[%s1 + $0x13c] sm:$0xf]
    %v286 = vunpack.c.l.b16 %v126
    %v287 = vunpack.c.l.b16 %v127
    %v288 = vunpack.c.l.b16 %v128
    %v289 = vunpack.c.l.b16 %v129
    %v290 = vunpack.c.l.b16 %v130
    %v291 = vunpack.c.l.b16 %v131
    %v292 = vunpack.c.l.b16 %v132
    %v293 = vunpack.c.l.b16 %v133
    %v294 = vunpack.c.l.b16 %v134
    %v295 = vunpack.c.l.b16 %v135
    %v296 = vunpack.c.l.b16 %v136
    %v297 = vunpack.c.l.b16 %v137
    %v298 = vunpack.c.l.b16 %v138
    %v299 = vunpack.c.l.b16 %v139
    %v300 = vunpack.c.l.b16 %v140
    %v301 = vunpack.c.l.b16 %v141
    %v302 = vunpack.c.l.b16 %v142
    %v303 = vunpack.c.l.b16 %v143
    %v304 = vunpack.c.l.b16 %v144
    %v305 = vunpack.c.l.b16 %v145
    %v306 = vunpack.c.l.b16 %v146
    %v307 = vunpack.c.l.b16 %v147
    %v308 = vunpack.c.l.b16 %v148
    %v309 = vunpack.c.l.b16 %v149
    %v310 = vunpack.c.l.b16 %v150
    %v311 = vunpack.c.l.b16 %v151
    %v312 = vunpack.c.l.b16 %v152
    %v313 = vunpack.c.l.b16 %v153
    %v314 = vunpack.c.l.b16 %v154
    %v315 = vunpack.c.l.b16 %v155
    %v316 = vunpack.c.l.b16 %v156
    %v317 = vunpack.c.l.b16 %v157
    %v318 = vunpack.c.l.b16 %v158
    %v319 = vunpack.c.l.b16 %v159
    %v320 = vunpack.c.l.b16 %v160
    %v321 = vunpack.c.l.b16 %v161
    %v322 = vunpack.c.l.b16 %v162
    %v323 = vunpack.c.l.b16 %v163
    %v324 = vunpack.c.l.b16 %v164
    %v325 = vunpack.c.l.b16 %v165
    %v326 = vunpack.c.l.b16 %v166
    %v327 = vunpack.c.l.b16 %v167
    %v328 = vunpack.c.l.b16 %v168
    %v329 = vunpack.c.l.b16 %v169
    %v330 = vunpack.c.l.b16 %v170
    %v331 = vunpack.c.l.b16 %v171
    %v332 = vunpack.c.l.b16 %v172
    %v333 = vunpack.c.l.b16 %v173
    %v334 = vunpack.c.l.b16 %v174
    %v335 = vunpack.c.l.b16 %v175
    %v336 = vunpack.c.l.b16 %v176
    %v337 = vunpack.c.l.b16 %v177
    %v338 = vunpack.c.l.b16 %v178
    %v339 = vunpack.c.l.b16 %v179
    %v340 = vunpack.c.l.b16 %v180
    %v341 = vunpack.c.l.b16 %v181
    %v342 = vunpack.c.l.b16 %v182
    %v343 = vunpack.c.l.b16 %v183
    %v344 = vunpack.c.l.b16 %v184
    %v345 = vunpack.c.l.b16 %v185
    %v346 = vunpack.c.l.b16 %v186
    %v347 = vunpack.c.l.b16 %v187
    %v348 = vunpack.c.l.b16 %v188
    %v349 = vunpack.c.l.b16 %v189
    %v350 = vunpack.c.l.b16 %v190
    %v351 = vunpack.c.l.b16 %v191
    %v352 = vunpack.c.l.b16 %v192
    %v353 = vunpack.c.l.b16 %v193
    %v354 = vunpack.c.l.b16 %v194
    %v355 = vunpack.c.l.b16 %v195
    %v356 = vunpack.c.l.b16 %v196
    %v357 = vunpack.c.l.b16 %v197
    %v358 = vunpack.c.l.b16 %v198
    %v359 = vunpack.c.l.b16 %v199
    %v360 = vunpack.c.l.b16 %v200
    %v361 = vunpack.c.l.b16 %v201
    %v362 = vunpack.c.l.b16 %v202
    %v363 = vunpack.c.l.b16 %v203
    %v364 = vunpack.c.l.b16 %v204
    %v365 = vunpack.c.l.b16 %v205
    %v366 = vpack.c.b16 %v287, %v286
    %v367 = vpack.c.b16 %v289, %v288
    %v368 = vpack.c.b16 %v291, %v290
    %v369 = vpack.c.b16 %v293, %v292
    %v370 = vpack.c.b16 %v295, %v294
    %v371 = vpack.c.b16 %v297, %v296
    %v372 = vpack.c.b16 %v299, %v298
    %v373 = vpack.c.b16 %v301, %v300
    %v374 = vpack.c.b16 %v303, %v302
    %v375 = vpack.c.b16 %v305, %v304
    %v376 = vpack.c.b16 %v307, %v306
    %v377 = vpack.c.b16 %v309, %v308
    %v378 = vpack.c.b16 %v311, %v310
    %v379 = vpack.c.b16 %v313, %v312
    %v380 = vpack.c.b16 %v315, %v314
    %v381 = vpack.c.b16 %v317, %v316
    %v382 = vpack.c.b16 %v319, %v318
    %v383 = vpack.c.b16 %v321, %v320
    %v384 = vpack.c.b16 %v323, %v322
    %v385 = vpack.c.b16 %v325, %v324
    %v386 = vpack.c.b16 %v327, %v326
    %v387 = vpack.c.b16 %v329, %v328
    %v388 = vpack.c.b16 %v331, %v330
    %v389 = vpack.c.b16 %v333, %v332
    %v390 = vpack.c.b16 %v335, %v334
    %v391 = vpack.c.b16 %v337, %v336
    %v392 = vpack.c.b16 %v339, %v338
    %v393 = vpack.c.b16 %v341, %v340
    %v394 = vpack.c.b16 %v343, %v342
    %v395 = vpack.c.b16 %v345, %v344
    %v396 = vpack.c.b16 %v347, %v346
    %v397 = vpack.c.b16 %v349, %v348
    %v398 = vpack.c.b16 %v351, %v350
    %v399 = vpack.c.b16 %v353, %v352
    %v400 = vpack.c.b16 %v355, %v354
    %v401 = vpack.c.b16 %v357, %v356
    %v402 = vpack.c.b16 %v359, %v358
    %v403 = vpack.c.b16 %v361, %v360
    %v404 = vpack.c.b16 %v363, %v362
    %v405 = vpack.c.b16 %v365, %v364
    %446 = vmatpush.bf16.msra.mxu0 %v373
    %447 = vmatpush.bf16.msra.mxu0 %v372
    %448 = vmatpush.bf16.msra.mxu0 %v371
    %449 = vmatpush.bf16.msra.mxu0 %v370
    %450 = vmatpush.bf16.msra.mxu0 %v369
    %451 = vmatpush.bf16.msra.mxu0 %v368
    %452 = vmatpush.bf16.msra.mxu0 %v367
    %453 = vmatpush.bf16.msra.mxu0 %v366
    %454 = vmatmul.bf16.gmra.mxu0 %v116
    %v455 = vpop.f32.mrf.mxu0
    %v456 = vadd.f32 0.0, %v455
    %v457 = vpop.f32.mrf.mxu0
    %v458 = vadd.f32 0.0, %v457
    %459 = vmatmul.bf16.gmra.mxu0 %v121
    %v460 = vpop.f32.mrf.mxu0
    %v461 = vadd.f32 0.0, %v460
    %v462 = vpop.f32.mrf.mxu0
    %v463 = vadd.f32 0.0, %v462
    %464 = vdwg.mxu0
    %465 = vmatpush.bf16.msra.mxu0 %v381
    %466 = vmatpush.bf16.msra.mxu0 %v380
    %467 = vmatpush.bf16.msra.mxu0 %v379
    %468 = vmatpush.bf16.msra.mxu0 %v378
    %469 = vmatpush.bf16.msra.mxu0 %v377
    %470 = vmatpush.bf16.msra.mxu0 %v376
    %471 = vmatpush.bf16.msra.mxu0 %v375
    %472 = vmatpush.bf16.msra.mxu0 %v374
    %473 = vmatmul.bf16.gmra.mxu0 %v117
    %v474 = vpop.f32.mrf.mxu0
    %v475 = vadd.f32 %v456, %v474
    %v476 = vpop.f32.mrf.mxu0
    %v477 = vadd.f32 %v458, %v476
    %478 = vmatmul.bf16.gmra.mxu0 %v122
    %v479 = vpop.f32.mrf.mxu0
    %v480 = vadd.f32 %v461, %v479
    %v481 = vpop.f32.mrf.mxu0
    %v482 = vadd.f32 %v463, %v481
    %483 = vdwg.mxu0
    %484 = vmatpush.bf16.msra.mxu0 %v389
    %485 = vmatpush.bf16.msra.mxu0 %v388
    %486 = vmatpush.bf16.msra.mxu0 %v387
    %487 = vmatpush.bf16.msra.mxu0 %v386
    %488 = vmatpush.bf16.msra.mxu0 %v385
    %489 = vmatpush.bf16.msra.mxu0 %v384
    %490 = vmatpush.bf16.msra.mxu0 %v383
    %491 = vmatpush.bf16.msra.mxu0 %v382
    %492 = vmatmul.bf16.gmra.mxu0 %v118
    %v493 = vpop.f32.mrf.mxu0
    %v494 = vadd.f32 %v475, %v493
    %v495 = vpop.f32.mrf.mxu0
    %v496 = vadd.f32 %v477, %v495
    %497 = vmatmul.bf16.gmra.mxu0 %v123
    %v498 = vpop.f32.mrf.mxu0
    %v499 = vadd.f32 %v480, %v498
    %v500 = vpop.f32.mrf.mxu0
    %v501 = vadd.f32 %v482, %v500
    %502 = vdwg.mxu0
    %503 = vmatpush.bf16.msra.mxu0 %v397
    %504 = vmatpush.bf16.msra.mxu0 %v396
    %505 = vmatpush.bf16.msra.mxu0 %v395
    %506 = vmatpush.bf16.msra.mxu0 %v394
    %507 = vmatpush.bf16.msra.mxu0 %v393
    %508 = vmatpush.bf16.msra.mxu0 %v392
    %509 = vmatpush.bf16.msra.mxu0 %v391
    %510 = vmatpush.bf16.msra.mxu0 %v390
    %511 = vmatmul.bf16.gmra.mxu0 %v119
    %v512 = vpop.f32.mrf.mxu0
    %v513 = vadd.f32 %v494, %v512
    %v514 = vpop.f32.mrf.mxu0
    %v515 = vadd.f32 %v496, %v514
    %516 = vmatmul.bf16.gmra.mxu0 %v124
    %v517 = vpop.f32.mrf.mxu0
    %v518 = vadd.f32 %v499, %v517
    %v519 = vpop.f32.mrf.mxu0
    %v520 = vadd.f32 %v501, %v519
    %521 = vdwg.mxu0
    %522 = vmatpush.bf16.msra.mxu0 %v405
    %523 = vmatpush.bf16.msra.mxu0 %v404
    %524 = vmatpush.bf16.msra.mxu0 %v403
    %525 = vmatpush.bf16.msra.mxu0 %v402
    %526 = vmatpush.bf16.msra.mxu0 %v401
    %527 = vmatpush.bf16.msra.mxu0 %v400
    %528 = vmatpush.bf16.msra.mxu0 %v399
    %529 = vmatpush.bf16.msra.mxu0 %v398
    %530 = vmatmul.bf16.gmra.mxu0 %v120
    %v531 = vpop.f32.mrf.mxu0
    %v532 = vadd.f32 %v513, %v531
    %v533 = vpop.f32.mrf.mxu0
    %v534 = vadd.f32 %v515, %v533
    %535 = vmatmul.bf16.gmra.mxu0 %v125
    %v536 = vpop.f32.mrf.mxu0
    %v537 = vadd.f32 %v518, %v536
    %v538 = vpop.f32.mrf.mxu0
    %v539 = vadd.f32 %v520, %v538
    %540 = vdwg.mxu0
    %v541 = vadd.f32 %v532, %v534
    %v542 = vadd.f32 %v541, %v537
    %v543 = vadd.f32 %v542, %v539
    %v544 = vrot.slane %v543, 4
    %v545 = vadd.f32 %v543, %v544
    %v546 = vrot.slane %v545, 2
    %v547 = vadd.f32 %v545, %v546
    %v548 = vrot.slane %v547, 1
    %v549 = vadd.f32 %v547, %v548
    %v550 = vrcp.pop 32.0
    %v551 = vmul.f32 32.0, %v550
    %v552 = vsub.f32 1.0, %v551
    %v553 = vmul.f32 %v550, %v552
    %v554 = vadd.f32 %v550, %v553
    %vm555 = vweird.f32 %v550
    %v556 = vsel %vm555, %v550, %v554
    %v557 = vmul.f32 %v549, %v556
    %v558 = vsub.f32 %v532, %v557
    %v559 = vsub.f32 %v534, %v557
    %v560 = vsub.f32 %v537, %v557
    %v561 = vsub.f32 %v539, %v557
    %v562 = vmul.f32 %v558, %v558
    %v563 = vmul.f32 %v559, %v559
    %v564 = vmul.f32 %v560, %v560
    %v565 = vmul.f32 %v561, %v561
    %v566 = vadd.f32 %v562, %v563
    %v567 = vadd.f32 %v566, %v564
    %v568 = vadd.f32 %v567, %v565
    %v569 = vrot.slane %v568, 4
    %v570 = vadd.f32 %v568, %v569
    %v571 = vrot.slane %v570, 2
    %v572 = vadd.f32 %v570, %v571
    %v573 = vrot.slane %v572, 1
    %v574 = vadd.f32 %v572, %v573
    %v575 = vmul.f32 %v574, %v556
    %v576 = vld [vmem:[%s2] sm:$0x1]
    %v577 = vadd.f32 %v575, 1e-05
    %v578 = vrsqrt.pop %v577
    %v579 = vmul.f32 %v578, %v577
    %v580 = vmul.f32 %v579, %v578
    %v581 = vmul.f32 0.5, %v580
    %v582 = vsub.f32 1.5, %v581
    %v583 = vmul.f32 %v578, %v582
    %vm584 = vweird.f32 %v577
    %vm585 = vweird.f32 %v578
    %vm586 = vmor %vm584, %vm585
    %v587 = vsel %vm586, %v578, %v583
    %v588 = vmul.f32 %v576, %v587
    %v589 = vld [vmem:[%s3] sm:$0x1]
    %v590 = vmul.f32 %v557, %v588
    %v591 = vsub.f32 %v589, %v590
    %v593 = vperm.slane %v588, 0
    %v595 = vmul.f32 %v532, %v593
    %v596 = vmul.f32 %v534, %v593
    %v597 = vmul.f32 %v537, %v593
    %v598 = vmul.f32 %v539, %v593
    %v600 = vperm.slane %v591, 0
    %v602 = vadd.f32 %v595, %v600
    %v603 = vadd.f32 %v596, %v600
    %v604 = vadd.f32 %v597, %v600
    %v605 = vadd.f32 %v598, %v600
    %v606 = vmax.f32 %v602, 0.0
    %v607 = vmax.f32 %v603, 0.0
    %v608 = vmax.f32 %v604, 0.0
    %v609 = vmax.f32 %v605, 0.0
    %v614 = vrot.slane %v606, 6
    %v615 = vrot.slane %v607, 6
    %v616 = vsel %vm35, %v614, %v615
    %v617 = vrot.slane %v608, 6
    %v618 = vrot.slane %v609, 6
    %v619 = vsel %vm35, %v617, %v618
    %v626 = vsel %vm35, 0.0, %v614
    %v627 = vsel %vm35, 0.0, %v617
    %v628 = vsel %vm35, %v615, 0.0
    %v629 = vsel %vm35, %v618, 0.0
    %v634 = vrot.slane %v626, 1
    %v635 = vrot.slane %v616, 1
    %v636 = vsel %vm56, %v634, %v635
    %v637 = vrot.slane %v628, 1
    %v638 = vsel %vm56, %v635, %v637
    %v639 = vrot.slane %v627, 1
    %v640 = vrot.slane %v619, 1
    %v641 = vsel %vm56, %v639, %v640
    %v642 = vrot.slane %v629, 1
    %v643 = vsel %vm56, %v640, %v642
    %v648 = vrot.slane %v626, 2
    %v649 = vrot.slane %v616, 2
    %v650 = vsel %vm71, %v648, %v649
    %v651 = vrot.slane %v628, 2
    %v652 = vsel %vm71, %v649, %v651
    %v653 = vrot.slane %v627, 2
    %v654 = vrot.slane %v619, 2
    %v655 = vsel %vm71, %v653, %v654
    %v656 = vrot.slane %v629, 2
    %v657 = vsel %vm71, %v654, %v656
    %v662 = vrot.slane %v626, 3
    %v663 = vrot.slane %v616, 3
    %v664 = vsel %vm86, %v662, %v663
    %v665 = vrot.slane %v628, 3
    %v666 = vsel %vm86, %v663, %v665
    %v667 = vrot.slane %v627, 3
    %v668 = vrot.slane %v619, 3
    %v669 = vsel %vm86, %v667, %v668
    %v670 = vrot.slane %v629, 3
    %v671 = vsel %vm86, %v668, %v670
    %v676 = vrot.slane %v626, 4
    %v677 = vrot.slane %v616, 4
    %v678 = vsel %vm101, %v676, %v677
    %v679 = vrot.slane %v628, 4
    %v680 = vsel %vm101, %v677, %v679
    %v681 = vrot.slane %v627, 4
    %v682 = vrot.slane %v619, 4
    %v683 = vsel %vm101, %v681, %v682
    %v684 = vrot.slane %v629, 4
    %v685 = vsel %vm101, %v682, %v684
    %v690 = vpack.c.bf16 %v616, %v626
    %v691 = vpack.c.bf16 %v638, %v636
    %v692 = vpack.c.bf16 %v652, %v650
    %v693 = vpack.c.bf16 %v666, %v664
    %v694 = vpack.c.bf16 %v680, %v678
    %v695 = vpack.c.bf16 %v619, %v627
    %v696 = vpack.c.bf16 %v643, %v641
    %v697 = vpack.c.bf16 %v657, %v655
    %v698 = vpack.c.bf16 %v671, %v669
    %v699 = vpack.c.bf16 %v685, %v683
    %v700 = vld [vmem:[%s4] sm:$0xf]
    %v701 = vld [vmem:[%s4 + $0x4] sm:$0xf]
    %v702 = vld [vmem:[%s4 + $0x8] sm:$0xf]
    %v703 = vld [vmem:[%s4 + $0xc] sm:$0xf]
    %v704 = vld [vmem:[%s4 + $0x10] sm:$0xf]
    %v705 = vld [vmem:[%s4 + $0x14] sm:$0xf]
    %v706 = vld [vmem:[%s4 + $0x18] sm:$0xf]
    %v707 = vld [vmem:[%s4 + $0x1c] sm:$0xf]
    %v708 = vld [vmem:[%s4 + $0x20] sm:$0xf]
    %v709 = vld [vmem:[%s4 + $0x24] sm:$0xf]
    %v710 = vld [vmem:[%s4 + $0x28] sm:$0xf]
    %v711 = vld [vmem:[%s4 + $0x2c] sm:$0xf]
    %v712 = vld [vmem:[%s4 + $0x30] sm:$0xf]
    %v713 = vld [vmem:[%s4 + $0x34] sm:$0xf]
    %v714 = vld [vmem:[%s4 + $0x38] sm:$0xf]
    %v715 = vld [vmem:[%s4 + $0x3c] sm:$0xf]
    %v716 = vld [vmem:[%s4 + $0x40] sm:$0xf]
    %v717 = vld [vmem:[%s4 + $0x44] sm:$0xf]
    %v718 = vld [vmem:[%s4 + $0x48] sm:$0xf]
    %v719 = vld [vmem:[%s4 + $0x4c] sm:$0xf]
    %v720 = vld [vmem:[%s4 + $0x50] sm:$0xf]
    %v721 = vld [vmem:[%s4 + $0x54] sm:$0xf]
    %v722 = vld [vmem:[%s4 + $0x58] sm:$0xf]
    %v723 = vld [vmem:[%s4 + $0x5c] sm:$0xf]
    %v724 = vld [vmem:[%s4 + $0x60] sm:$0xf]
    %v725 = vld [vmem:[%s4 + $0x64] sm:$0xf]
    %v726 = vld [vmem:[%s4 + $0x68] sm:$0xf]
    %v727 = vld [vmem:[%s4 + $0x6c] sm:$0xf]
    %v728 = vld [vmem:[%s4 + $0x70] sm:$0xf]
    %v729 = vld [vmem:[%s4 + $0x74] sm:$0xf]
    %v730 = vld [vmem:[%s4 + $0x78] sm:$0xf]
    %v731 = vld [vmem:[%s4 + $0x7c] sm:$0xf]
    %v732 = vld [vmem:[%s4 + $0x80] sm:$0xf]
    %v733 = vld [vmem:[%s4 + $0x84] sm:$0xf]
    %v734 = vld [vmem:[%s4 + $0x88] sm:$0xf]
    %v735 = vld [vmem:[%s4 + $0x8c] sm:$0xf]
    %v736 = vld [vmem:[%s4 + $0x90] sm:$0xf]
    %v737 = vld [vmem:[%s4 + $0x94] sm:$0xf]
    %v738 = vld [vmem:[%s4 + $0x98] sm:$0xf]
    %v739 = vld [vmem:[%s4 + $0x9c] sm:$0xf]
    %v740 = vld [vmem:[%s4 + $0xa0] sm:$0xf]
    %v741 = vld [vmem:[%s4 + $0xa4] sm:$0xf]
    %v742 = vld [vmem:[%s4 + $0xa8] sm:$0xf]
    %v743 = vld [vmem:[%s4 + $0xac] sm:$0xf]
    %v744 = vld [vmem:[%s4 + $0xb0] sm:$0xf]
    %v745 = vld [vmem:[%s4 + $0xb4] sm:$0xf]
    %v746 = vld [vmem:[%s4 + $0xb8] sm:$0xf]
    %v747 = vld [vmem:[%s4 + $0xbc] sm:$0xf]
    %v748 = vld [vmem:[%s4 + $0xc0] sm:$0xf]
    %v749 = vld [vmem:[%s4 + $0xc4] sm:$0xf]
    %v750 = vld [vmem:[%s4 + $0xc8] sm:$0xf]
    %v751 = vld [vmem:[%s4 + $0xcc] sm:$0xf]
    %v752 = vld [vmem:[%s4 + $0xd0] sm:$0xf]
    %v753 = vld [vmem:[%s4 + $0xd4] sm:$0xf]
    %v754 = vld [vmem:[%s4 + $0xd8] sm:$0xf]
    %v755 = vld [vmem:[%s4 + $0xdc] sm:$0xf]
    %v756 = vld [vmem:[%s4 + $0xe0] sm:$0xf]
    %v757 = vld [vmem:[%s4 + $0xe4] sm:$0xf]
    %v758 = vld [vmem:[%s4 + $0xe8] sm:$0xf]
    %v759 = vld [vmem:[%s4 + $0xec] sm:$0xf]
    %v760 = vld [vmem:[%s4 + $0xf0] sm:$0xf]
    %v761 = vld [vmem:[%s4 + $0xf4] sm:$0xf]
    %v762 = vld [vmem:[%s4 + $0xf8] sm:$0xf]
    %v763 = vld [vmem:[%s4 + $0xfc] sm:$0xf]
    %v764 = vld [vmem:[%s4 + $0x100] sm:$0xf]
    %v765 = vld [vmem:[%s4 + $0x104] sm:$0xf]
    %v766 = vld [vmem:[%s4 + $0x108] sm:$0xf]
    %v767 = vld [vmem:[%s4 + $0x10c] sm:$0xf]
    %v768 = vld [vmem:[%s4 + $0x110] sm:$0xf]
    %v769 = vld [vmem:[%s4 + $0x114] sm:$0xf]
    %v770 = vld [vmem:[%s4 + $0x118] sm:$0xf]
    %v771 = vld [vmem:[%s4 + $0x11c] sm:$0xf]
    %v772 = vld [vmem:[%s4 + $0x120] sm:$0xf]
    %v773 = vld [vmem:[%s4 + $0x124] sm:$0xf]
    %v774 = vld [vmem:[%s4 + $0x128] sm:$0xf]
    %v775 = vld [vmem:[%s4 + $0x12c] sm:$0xf]
    %v776 = vld [vmem:[%s4 + $0x130] sm:$0xf]
    %v777 = vld [vmem:[%s4 + $0x134] sm:$0xf]
    %v778 = vld [vmem:[%s4 + $0x138] sm:$0xf]
    %v779 = vld [vmem:[%s4 + $0x13c] sm:$0xf]
    %v860 = vunpack.c.l.b16 %v700
    %v861 = vunpack.c.l.b16 %v701
    %v862 = vunpack.c.l.b16 %v702
    %v863 = vunpack.c.l.b16 %v703
    %v864 = vunpack.c.l.b16 %v704
    %v865 = vunpack.c.l.b16 %v705
    %v866 = vunpack.c.l.b16 %v706
    %v867 = vunpack.c.l.b16 %v707
    %v868 = vunpack.c.l.b16 %v708
    %v869 = vunpack.c.l.b16 %v709
    %v870 = vunpack.c.l.b16 %v710
    %v871 = vunpack.c.l.b16 %v711
    %v872 = vunpack.c.l.b16 %v712
    %v873 = vunpack.c.l.b16 %v713
    %v874 = vunpack.c.l.b16 %v714
    %v875 = vunpack.c.l.b16 %v715
    %v876 = vunpack.c.l.b16 %v716
    %v877 = vunpack.c.l.b16 %v717
    %v878 = vunpack.c.l.b16 %v718
    %v879 = vunpack.c.l.b16 %v719
    %v880 = vunpack.c.l.b16 %v720
    %v881 = vunpack.c.l.b16 %v721
    %v882 = vunpack.c.l.b16 %v722
    %v883 = vunpack.c.l.b16 %v723
    %v884 = vunpack.c.l.b16 %v724
    %v885 = vunpack.c.l.b16 %v725
    %v886 = vunpack.c.l.b16 %v726
    %v887 = vunpack.c.l.b16 %v727
    %v888 = vunpack.c.l.b16 %v728
    %v889 = vunpack.c.l.b16 %v729
    %v890 = vunpack.c.l.b16 %v730
    %v891 = vunpack.c.l.b16 %v731
    %v892 = vunpack.c.l.b16 %v732
    %v893 = vunpack.c.l.b16 %v733
    %v894 = vunpack.c.l.b16 %v734
    %v895 = vunpack.c.l.b16 %v735
    %v896 = vunpack.c.l.b16 %v736
    %v897 = vunpack.c.l.b16 %v737
    %v898 = vunpack.c.l.b16 %v738
    %v899 = vunpack.c.l.b16 %v739
    %v900 = vunpack.c.l.b16 %v740
    %v901 = vunpack.c.l.b16 %v741
    %v902 = vunpack.c.l.b16 %v742
    %v903 = vunpack.c.l.b16 %v743
    %v904 = vunpack.c.l.b16 %v744
    %v905 = vunpack.c.l.b16 %v745
    %v906 = vunpack.c.l.b16 %v746
    %v907 = vunpack.c.l.b16 %v747
    %v908 = vunpack.c.l.b16 %v748
    %v909 = vunpack.c.l.b16 %v749
    %v910 = vunpack.c.l.b16 %v750
    %v911 = vunpack.c.l.b16 %v751
    %v912 = vunpack.c.l.b16 %v752
    %v913 = vunpack.c.l.b16 %v753
    %v914 = vunpack.c.l.b16 %v754
    %v915 = vunpack.c.l.b16 %v755
    %v916 = vunpack.c.l.b16 %v756
    %v917 = vunpack.c.l.b16 %v757
    %v918 = vunpack.c.l.b16 %v758
    %v919 = vunpack.c.l.b16 %v759
    %v920 = vunpack.c.l.b16 %v760
    %v921 = vunpack.c.l.b16 %v761
    %v922 = vunpack.c.l.b16 %v762
    %v923 = vunpack.c.l.b16 %v763
    %v924 = vunpack.c.l.b16 %v764
    %v925 = vunpack.c.l.b16 %v765
    %v926 = vunpack.c.l.b16 %v766
    %v927 = vunpack.c.l.b16 %v767
    %v928 = vunpack.c.l.b16 %v768
    %v929 = vunpack.c.l.b16 %v769
    %v930 = vunpack.c.l.b16 %v770
    %v931 = vunpack.c.l.b16 %v771
    %v932 = vunpack.c.l.b16 %v772
    %v933 = vunpack.c.l.b16 %v773
    %v934 = vunpack.c.l.b16 %v774
    %v935 = vunpack.c.l.b16 %v775
    %v936 = vunpack.c.l.b16 %v776
    %v937 = vunpack.c.l.b16 %v777
    %v938 = vunpack.c.l.b16 %v778
    %v939 = vunpack.c.l.b16 %v779
    %v940 = vpack.c.b16 %v861, %v860
    %v941 = vpack.c.b16 %v863, %v862
    %v942 = vpack.c.b16 %v865, %v864
    %v943 = vpack.c.b16 %v867, %v866
    %v944 = vpack.c.b16 %v869, %v868
    %v945 = vpack.c.b16 %v871, %v870
    %v946 = vpack.c.b16 %v873, %v872
    %v947 = vpack.c.b16 %v875, %v874
    %v948 = vpack.c.b16 %v877, %v876
    %v949 = vpack.c.b16 %v879, %v878
    %v950 = vpack.c.b16 %v881, %v880
    %v951 = vpack.c.b16 %v883, %v882
    %v952 = vpack.c.b16 %v885, %v884
    %v953 = vpack.c.b16 %v887, %v886
    %v954 = vpack.c.b16 %v889, %v888
    %v955 = vpack.c.b16 %v891, %v890
    %v956 = vpack.c.b16 %v893, %v892
    %v957 = vpack.c.b16 %v895, %v894
    %v958 = vpack.c.b16 %v897, %v896
    %v959 = vpack.c.b16 %v899, %v898
    %v960 = vpack.c.b16 %v901, %v900
    %v961 = vpack.c.b16 %v903, %v902
    %v962 = vpack.c.b16 %v905, %v904
    %v963 = vpack.c.b16 %v907, %v906
    %v964 = vpack.c.b16 %v909, %v908
    %v965 = vpack.c.b16 %v911, %v910
    %v966 = vpack.c.b16 %v913, %v912
    %v967 = vpack.c.b16 %v915, %v914
    %v968 = vpack.c.b16 %v917, %v916
    %v969 = vpack.c.b16 %v919, %v918
    %v970 = vpack.c.b16 %v921, %v920
    %v971 = vpack.c.b16 %v923, %v922
    %v972 = vpack.c.b16 %v925, %v924
    %v973 = vpack.c.b16 %v927, %v926
    %v974 = vpack.c.b16 %v929, %v928
    %v975 = vpack.c.b16 %v931, %v930
    %v976 = vpack.c.b16 %v933, %v932
    %v977 = vpack.c.b16 %v935, %v934
    %v978 = vpack.c.b16 %v937, %v936
    %v979 = vpack.c.b16 %v939, %v938
    %1020 = vmatpush.bf16.msra.mxu0 %v947
    %1021 = vmatpush.bf16.msra.mxu0 %v946
    %1022 = vmatpush.bf16.msra.mxu0 %v945
    %1023 = vmatpush.bf16.msra.mxu0 %v944
    %1024 = vmatpush.bf16.msra.mxu0 %v943
    %1025 = vmatpush.bf16.msra.mxu0 %v942
    %1026 = vmatpush.bf16.msra.mxu0 %v941
    %1027 = vmatpush.bf16.msra.mxu0 %v940
    %1028 = vmatmul.bf16.gmra.mxu0 %v690
    %v1029 = vpop.f32.mrf.mxu0
    %v1030 = vadd.f32 0.0, %v1029
    %v1031 = vpop.f32.mrf.mxu0
    %v1032 = vadd.f32 0.0, %v1031
    %1033 = vmatmul.bf16.gmra.mxu0 %v695
    %v1034 = vpop.f32.mrf.mxu0
    %v1035 = vadd.f32 0.0, %v1034
    %v1036 = vpop.f32.mrf.mxu0
    %v1037 = vadd.f32 0.0, %v1036
    %1038 = vdwg.mxu0
    %1039 = vmatpush.bf16.msra.mxu0 %v955
    %1040 = vmatpush.bf16.msra.mxu0 %v954
    %1041 = vmatpush.bf16.msra.mxu0 %v953
    %1042 = vmatpush.bf16.msra.mxu0 %v952
    %1043 = vmatpush.bf16.msra.mxu0 %v951
    %1044 = vmatpush.bf16.msra.mxu0 %v950
    %1045 = vmatpush.bf16.msra.mxu0 %v949
    %1046 = vmatpush.bf16.msra.mxu0 %v948
    %1047 = vmatmul.bf16.gmra.mxu0 %v691
    %v1048 = vpop.f32.mrf.mxu0
    %v1049 = vadd.f32 %v1030, %v1048
    %v1050 = vpop.f32.mrf.mxu0
    %v1051 = vadd.f32 %v1032, %v1050
    %1052 = vmatmul.bf16.gmra.mxu0 %v696
    %v1053 = vpop.f32.mrf.mxu0
    %v1054 = vadd.f32 %v1035, %v1053
    %v1055 = vpop.f32.mrf.mxu0
    %v1056 = vadd.f32 %v1037, %v1055
    %1057 = vdwg.mxu0
    %1058 = vmatpush.bf16.msra.mxu0 %v963
    %1059 = vmatpush.bf16.msra.mxu0 %v962
    %1060 = vmatpush.bf16.msra.mxu0 %v961
    %1061 = vmatpush.bf16.msra.mxu0 %v960
    %1062 = vmatpush.bf16.msra.mxu0 %v959
    %1063 = vmatpush.bf16.msra.mxu0 %v958
    %1064 = vmatpush.bf16.msra.mxu0 %v957
    %1065 = vmatpush.bf16.msra.mxu0 %v956
    %1066 = vmatmul.bf16.gmra.mxu0 %v692
    %v1067 = vpop.f32.mrf.mxu0
    %v1068 = vadd.f32 %v1049, %v1067
    %v1069 = vpop.f32.mrf.mxu0
    %v1070 = vadd.f32 %v1051, %v1069
    %1071 = vmatmul.bf16.gmra.mxu0 %v697
    %v1072 = vpop.f32.mrf.mxu0
    %v1073 = vadd.f32 %v1054, %v1072
    %v1074 = vpop.f32.mrf.mxu0
    %v1075 = vadd.f32 %v1056, %v1074
    %1076 = vdwg.mxu0
    %1077 = vmatpush.bf16.msra.mxu0 %v971
    %1078 = vmatpush.bf16.msra.mxu0 %v970
    %1079 = vmatpush.bf16.msra.mxu0 %v969
    %1080 = vmatpush.bf16.msra.mxu0 %v968
    %1081 = vmatpush.bf16.msra.mxu0 %v967
    %1082 = vmatpush.bf16.msra.mxu0 %v966
    %1083 = vmatpush.bf16.msra.mxu0 %v965
    %1084 = vmatpush.bf16.msra.mxu0 %v964
    %1085 = vmatmul.bf16.gmra.mxu0 %v693
    %v1086 = vpop.f32.mrf.mxu0
    %v1087 = vadd.f32 %v1068, %v1086
    %v1088 = vpop.f32.mrf.mxu0
    %v1089 = vadd.f32 %v1070, %v1088
    %1090 = vmatmul.bf16.gmra.mxu0 %v698
    %v1091 = vpop.f32.mrf.mxu0
    %v1092 = vadd.f32 %v1073, %v1091
    %v1093 = vpop.f32.mrf.mxu0
    %v1094 = vadd.f32 %v1075, %v1093
    %1095 = vdwg.mxu0
    %1096 = vmatpush.bf16.msra.mxu0 %v979
    %1097 = vmatpush.bf16.msra.mxu0 %v978
    %1098 = vmatpush.bf16.msra.mxu0 %v977
    %1099 = vmatpush.bf16.msra.mxu0 %v976
    %1100 = vmatpush.bf16.msra.mxu0 %v975
    %1101 = vmatpush.bf16.msra.mxu0 %v974
    %1102 = vmatpush.bf16.msra.mxu0 %v973
    %1103 = vmatpush.bf16.msra.mxu0 %v972
    %1104 = vmatmul.bf16.gmra.mxu0 %v694
    %v1105 = vpop.f32.mrf.mxu0
    %v1106 = vadd.f32 %v1087, %v1105
    %v1107 = vpop.f32.mrf.mxu0
    %v1108 = vadd.f32 %v1089, %v1107
    %1109 = vmatmul.bf16.gmra.mxu0 %v699
    %v1110 = vpop.f32.mrf.mxu0
    %v1111 = vadd.f32 %v1092, %v1110
    %v1112 = vpop.f32.mrf.mxu0
    %v1113 = vadd.f32 %v1094, %v1112
    %1114 = vdwg.mxu0
    %v1115 = vadd.f32 %v1106, %v1108
    %v1116 = vadd.f32 %v1115, %v1111
    %v1117 = vadd.f32 %v1116, %v1113
    %v1118 = vrot.slane %v1117, 4
    %v1119 = vadd.f32 %v1117, %v1118
    %v1120 = vrot.slane %v1119, 2
    %v1121 = vadd.f32 %v1119, %v1120
    %v1122 = vrot.slane %v1121, 1
    %v1123 = vadd.f32 %v1121, %v1122
    %v1124 = vmul.f32 %v1123, %v556
    %v1125 = vsub.f32 %v1106, %v1124
    %v1126 = vsub.f32 %v1108, %v1124
    %v1127 = vsub.f32 %v1111, %v1124
    %v1128 = vsub.f32 %v1113, %v1124
    %v1129 = vmul.f32 %v1125, %v1125
    %v1130 = vmul.f32 %v1126, %v1126
    %v1131 = vmul.f32 %v1127, %v1127
    %v1132 = vmul.f32 %v1128, %v1128
    %v1133 = vadd.f32 %v1129, %v1130
    %v1134 = vadd.f32 %v1133, %v1131
    %v1135 = vadd.f32 %v1134, %v1132
    %v1136 = vrot.slane %v1135, 4
    %v1137 = vadd.f32 %v1135, %v1136
    %v1138 = vrot.slane %v1137, 2
    %v1139 = vadd.f32 %v1137, %v1138
    %v1140 = vrot.slane %v1139, 1
    %v1141 = vadd.f32 %v1139, %v1140
    %v1142 = vmul.f32 %v1141, %v556
    %v1143 = vld [vmem:[%s5] sm:$0x1]
    %v1144 = vadd.f32 %v1142, 1e-05
    %v1145 = vrsqrt.pop %v1144
    %v1146 = vmul.f32 %v1145, %v1144
    %v1147 = vmul.f32 %v1146, %v1145
    %v1148 = vmul.f32 0.5, %v1147
    %v1149 = vsub.f32 1.5, %v1148
    %v1150 = vmul.f32 %v1145, %v1149
    %vm1151 = vweird.f32 %v1144
    %vm1152 = vweird.f32 %v1145
    %vm1153 = vmor %vm1151, %vm1152
    %v1154 = vsel %vm1153, %v1145, %v1150
    %v1155 = vmul.f32 %v1143, %v1154
    %v1156 = vld [vmem:[%s6] sm:$0x1]
    %v1157 = vmul.f32 %v1124, %v1155
    %v1158 = vsub.f32 %v1156, %v1157
    %v1160 = vperm.slane %v1155, 0
    %v1162 = vmul.f32 %v1106, %v1160
    %v1163 = vmul.f32 %v1108, %v1160
    %v1164 = vmul.f32 %v1111, %v1160
    %v1165 = vmul.f32 %v1113, %v1160
    %v1167 = vperm.slane %v1158, 0
    %v1169 = vadd.f32 %v1162, %v1167
    %v1170 = vadd.f32 %v1163, %v1167
    %v1171 = vadd.f32 %v1164, %v1167
    %v1172 = vadd.f32 %v1165, %v1167
    %v1173 = vmax.f32 %v1169, 0.0
    %v1174 = vmax.f32 %v1170, 0.0
    %v1175 = vmax.f32 %v1171, 0.0
    %v1176 = vmax.f32 %v1172, 0.0
    %1177 = vst [vmem:[#allocation2] sm:$0xff] %v1173
    %1178 = vst [vmem:[#allocation2 + $0x8] sm:$0xff] %v1174
    %1179 = vst [vmem:[#allocation2 + $0x10] sm:$0xff] %v1175
    %1180 = vst [vmem:[#allocation2 + $0x18] sm:$0xff] %v1176
    // Predicated region
    $region30: #{bridge_forward.1} parent=1 // pred_check
      _
    $region31: #{bridge_forward.1} parent=1 // pred_check_branch
      %1182 = sbr.rel (0) target = $region33
    $region32: #{bridge_forward.1} parent=1 // pred_region
      %1184 = vsyncadd [#allocation3], 0
      %s1185 = sshll.u32 [#allocation2], 4
      %s1186 = int_to_ptr.vmem [resolvable:$true] %s1185
      %s1187 = sshll.u32 %s7, 4
      %s1188 = int_to_ptr.hbm [resolvable:$true] %s1187
      %1193 = dma.vmem_to_hbm [thread:$0]  %s1186, 512, %s1188, [#allocation3], 128, 128, 8
    $region33: #{bridge_forward.1} parent=1 // pred_fallthru
      _
    // Predicated region
    $region34: #{bridge_forward.1} parent=1 // pred_check
      _
    $region35: #{bridge_forward.1} parent=1 // pred_check_branch
      %1195 = sbr.rel (0) target = $region37
    $region36: #{bridge_forward.1} parent=1 // pred_region
      %1197 = dma.done [#allocation3], 512
    $region37: #{bridge_forward.1} parent=1 // pred_fallthru
      _
    %1198 = vsyncpa [#allocation3], 1

</llo_original>
